<compile_context>
chip_gen: v6e
topology: v6e:2x2x1
jax: 0.10.0
libtpu: 0.0.40
codegen_flags: <defaults>
</compile_context>

<pallas_src>
import math

import jax
import jax.numpy as jnp
import numpy as np
from jax.experimental import pallas as pl
from jax.experimental.pallas import tpu as pltpu


# ------------------------------ Pallas kernel --------------------------------
def pe_add_kernel(x_ref, pe_ref, o_ref):
    # x_ref, pe_ref, o_ref: (rows_blk, C) — shape-matched 2-D add, no broadcast.
    o_ref[...] = x_ref[...] + pe_ref[...]


# ------------------------------- host wrapper ---------------------------------
MAX_BLOCK_BYTES = 4 << 20  # per-operand block budget; x/out double-buffered + resident pe
                           # stay well inside the 32 MiB default scoped VMEM on v5e/v6e/v7x


def positional_encoding_forward(x, pe, dropout_p=0.0):
    """x: (B, S, D); pe: (max_len, D) (already scaled by 0.1).
    Returns dropout(x + pe[None, :S, :]) with p=0 == x + pe[None, :S, :]."""
    assert dropout_p == 0.0, "module default dropout p=0 (identity); p>0 not implemented"
    B, S, D = x.shape
    assert pe.shape[0] >= S and pe.shape[1] == D
    pe_s = pe[:S].astype(x.dtype)
    itemsize = jnp.dtype(x.dtype).itemsize

    # ---- lane-dense fold factor: make the last dim a multiple of 128 when possible ----
    f = 128 // D if (D < 128 and 128 % D == 0) else 1
    if f > 1 and S % f != 0 and (B * S) % f != 0:
        # TODO(synk): pad S up to a fold multiple instead of masked-lane fallback.
        f = 1

    if f == 1 or S % f == 0:
        # --- Regime A: fold stays inside a batch element; pe block is resident in VMEM ---
        R, C = S // f, D * f
        # batch elements per grid step: largest divisor of B within budget,
        # preferring blocks whose sublane count is a multiple of 8.
        divs = [n for n in range(1, B + 1)
                if B % n == 0 and n * R * C * itemsize <= MAX_BLOCK_BYTES]
        if not divs:
            # TODO(synk): tile within a batch element (over S) for very long sequences.
            divs = [1]
        pref = [n for n in divs if (n * R) % 8 == 0]
        nb = max(pref) if pref else max(divs)
        rows_blk, n_blocks = nb * R, B // nb
        if n_blocks > 1 and rows_blk % 8 != 0:
            nb, rows_blk, n_blocks = B, B * R, 1  # keep block dims (8,128)-tile legal

        x2 = x.reshape(B * R, C)                                   # row-major regroup (exact)
        pe2 = pe_s.reshape(R, C)
        pe_blk = jnp.tile(pe2, (nb, 1)) if nb > 1 else pe2         # one block's worth only
        pe_index_map = lambda g: (0, 0)                            # same block every step
    else:
        # --- Regime B: fold crosses batch boundaries; tile pe across batch host-side ---
        C = D * f
        N = (B * S * D) // C
        x2 = x.reshape(N, C)
        pe_blk = jnp.broadcast_to(pe_s[None], (B, S, D)).reshape(N, C)
        divs = [n for n in range(1, N + 1)
                if N % n == 0 and n * C * itemsize <= MAX_BLOCK_BYTES]
        pref = [n for n in divs if n % 8 == 0]
        rows_blk = max(pref) if pref else max(divs)
        n_blocks = N // rows_blk
        pe_index_map = lambda g: (g, 0)

    out2 = pl.pallas_call(
        pe_add_kernel,
        out_shape=jax.ShapeDtypeStruct(x2.shape, x.dtype),
        grid=(n_blocks,),
        in_specs=[
            pl.BlockSpec((rows_blk, C), lambda g: (g, 0)),         # activation row block
            pl.BlockSpec((rows_blk, C), pe_index_map),             # pe table
        ],
        out_specs=pl.BlockSpec((rows_blk, C), lambda g: (g, 0)),
        compiler_params=pltpu.CompilerParams(
            dimension_semantics=("parallel",) if n_blocks > 1 else ("arbitrary",)),
    )(x2, pe_blk)
    return out2.reshape(B, S, D)


# --------------------- init-time pe buffer (plain-JAX glue) -------------------
def build_pe(max_len, d_model):
    position = jnp.arange(max_len, dtype=jnp.float32)[:, None]               # (L, 1)
    div_term = jnp.exp(jnp.arange(0, d_model, 2, dtype=jnp.float32)
                       * (-math.log(10000.0) / d_model))                     # (ceil(D/2),)
    ang = position * div_term                                                # (L, ceil(D/2))
    pe = jnp.zeros((max_len, d_model), jnp.float32)
    pe = pe.at[:, 0::2].set(jnp.sin(ang))
    pe = pe.at[:, 1::2].set(jnp.cos(ang[:, : d_model // 2]))                 # odd-D safe
    return pe * 0.1                                                          # `pe *= 0.1`


# ----------------------------------- main -------------------------------------
if __name__ == "__main__":
    B, S, D = 2, 16, 32          # batch, seq, d_model (small, module-consistent shapes)
    MAX_LEN = 64                 # buffer length; forward only uses pe[:S]

    key = jax.random.PRNGKey(0)
    x = jax.random.normal(key, (B, S, D), jnp.float32)
    pe = build_pe(MAX_LEN, D)

    out = jax.block_until_ready(positional_encoding_forward(x, pe))
    assert out.shape == (B, S, D)

    # pure-JAX reference: dropout(p=0) is identity, so forward == x + pe[:, :S]
    ref = x + pe[None, :S, :]
    np.testing.assert_allclose(np.asarray(out), np.asarray(ref), rtol=1e-6, atol=1e-6)

    print("KERNEL_OK")
</pallas_src>

<mosaic_0001>
module attributes {stable_mosaic.version = 11 : i64} {
  func.func @pe_add_kernel(%arg0: i32, %arg1: memref<8x128xf32, #tpu.memory_space<vmem>>, %arg2: memref<8x128xf32, #tpu.memory_space<vmem>>, %arg3: memref<8x128xf32, #tpu.memory_space<vmem>>) attributes {dimension_semantics = [#tpu.dimension_semantics<arbitrary>], iteration_bounds = array<i64: 1>, scalar_prefetch = 0 : i64, scratch_operands = 0 : i64, tpu.core_type = #tpu.core_type<tc>, window_params = [{transform_indices = @transform_0, window_bounds = array<i64: 8, 128>}, {pipeline_mode = #tpu.pipeline_mode<synchronous>, transform_indices = @transform_1, window_bounds = array<i64: 8, 128>}, {transform_indices = @transform_2, window_bounds = array<i64: 8, 128>}]} {
    %c0 = arith.constant 0 : index
    %c0_0 = arith.constant 0 : index
    %0 = vector.load %arg1[%c0, %c0_0] : memref<8x128xf32, #tpu.memory_space<vmem>>, vector<8x128xf32>
    %c0_1 = arith.constant 0 : index
    %c0_2 = arith.constant 0 : index
    %1 = vector.load %arg2[%c0_1, %c0_2] : memref<8x128xf32, #tpu.memory_space<vmem>>, vector<8x128xf32>
    %2 = arith.addf %0, %1 : vector<8x128xf32>
    %c0_3 = arith.constant 0 : index
    %c0_4 = arith.constant 0 : index
    %3 = vector.load %arg3[%c0_3, %c0_4] : memref<8x128xf32, #tpu.memory_space<vmem>>, vector<8x128xf32>
    tpu.vector_store %arg3[%c0_3, %c0_4], %2 {strides = array<i32>} : memref<8x128xf32, #tpu.memory_space<vmem>>, vector<8x128xf32>,
    return
  }
  func.func @transform_0(%arg0: i32) -> (i32, i32) {
    %c0_i32 = arith.constant 0 : i32
    %c0_i32_0 = arith.constant 0 : i32
    return %arg0, %c0_i32 : i32, i32
  }
  func.func @transform_1(%arg0: i32) -> (i32, i32) {
    %c0_i32 = arith.constant 0 : i32
    %c0_i32_0 = arith.constant 0 : i32
    %c0_i32_1 = arith.constant 0 : i32
    return %c0_i32, %c0_i32_0 : i32, i32
  }
  func.func @transform_2(%arg0: i32) -> (i32, i32) {
    %c0_i32 = arith.constant 0 : i32
    %c0_i32_0 = arith.constant 0 : i32
    return %arg0, %c0_i32 : i32, i32
  }
}

</mosaic_0001>

<llo_original>
// kernel: tpu_custom_call.1
$region0: #{tpu_custom_call.1}
  #allocation0 [shape = 'u32[]', space=smem, size = 0x4, offset = 0x4, fixed_abs, tag = 'smem constant byte address 0x4 - core index']
  #allocation1 [shape = 'u32[144,128]{1,0:T(1,128)}', space=vmem, size = 0x12000, scoped, tag = 'internal scratch']
  %s0 = inlined_call_operand.hbm [shape: f32[8,128], index: 0, kind: input, shape index: {}]
  %s1 = inlined_call_operand.hbm [shape: f32[8,128], index: 1, kind: input, shape index: {}]
  %s2 = inlined_call_operand.hbm [shape: f32[8,128], index: 2, kind: output, shape index: {}]
  %s3 = sld [smem:[#allocation0]]
  $region26: #{tpu_custom_call.1} parent=0
    _
  %s5 = ssub.s32 1, %s3
  %s6 = scalar_select 0, %s5, %s3
  $region1: #{tpu_custom_call.1} parent=0
    #allocation2 [shape = 'u8[4096]{0}', space=vmem, size = 0x1000, scoped, tag = 'input window, operand 0, single buffered']
    #allocation3 [shape = 's32[1]{0}', space=sflag, size = 0x4, scoped, tag = 'scoped memory for tpu_custom_call.1']
    #allocation4 [shape = 's32[1]{0}', space=sflag, size = 0x4, scoped, tag = 'scoped memory for tpu_custom_call.1']
    #allocation5 [shape = 'u8[4096]{0}', space=vmem, size = 0x1000, scoped, tag = 'input window, operand 1, single buffered']
    #allocation6 [shape = 's32[1]{0}', space=sflag, size = 0x4, scoped, tag = 'scoped memory for tpu_custom_call.1']
    #allocation7 [shape = 'u8[4096]{0}', space=vmem, size = 0x1000, scoped, tag = 'output window, operand 0, single buffered']
    %7 = vsyncpa [#allocation3], 0
    %8 = vsyncpa [#allocation6], 0
    %9 = vsyncpa [#allocation4], 0
    // Predicated region
    $region2: #{tpu_custom_call.1} parent=1 // pred_check
      _
    $region3: #{tpu_custom_call.1} parent=1 // pred_check_branch
      %11 = sbr.rel (0) target = $region5
    $region4: #{tpu_custom_call.1} parent=1 // pred_region
      %s13 = ssub.s32 128, 128
      %14 = vsyncadd [#allocation3], %s13
      %s16 = sshll.u32 [#allocation2], 4
      %s17 = int_to_ptr.vmem [resolvable:$true] %s16
      %19 = dma.hbm_to_vmem [thread:$0]  %s0, 128, %s17, [#allocation3]
    $region5: #{tpu_custom_call.1} parent=1 // pred_fallthru
      _
    // Predicated region
    $region6: #{tpu_custom_call.1} parent=1 // pred_check
      _
    $region7: #{tpu_custom_call.1} parent=1 // pred_check_branch
      %21 = sbr.rel (0) target = $region9
    $region8: #{tpu_custom_call.1} parent=1 // pred_region
      %s23 = ssub.s32 128, 128
      %24 = vsyncadd [#allocation6], %s23
      %s26 = sshll.u32 [#allocation5], 4
      %s27 = int_to_ptr.vmem [resolvable:$true] %s26
      %29 = dma.hbm_to_vmem [thread:$0]  %s1, 128, %s27, [#allocation6]
    $region9: #{tpu_custom_call.1} parent=1 // pred_fallthru
      _
    // Predicated region
    $region10: #{tpu_custom_call.1} parent=1 // pred_check
      _
    $region11: #{tpu_custom_call.1} parent=1 // pred_check_branch
      %31 = sbr.rel (0) target = $region13
    $region12: #{tpu_custom_call.1} parent=1 // pred_region
      %32 = dma.done [#allocation3], 128
    $region13: #{tpu_custom_call.1} parent=1 // pred_fallthru
      _
    // Predicated region
    $region14: #{tpu_custom_call.1} parent=1 // pred_check
      _
    $region15: #{tpu_custom_call.1} parent=1 // pred_check_branch
      %34 = sbr.rel (0) target = $region17
    $region16: #{tpu_custom_call.1} parent=1 // pred_region
      %35 = dma.done [#allocation6], 128
    $region17: #{tpu_custom_call.1} parent=1 // pred_fallthru
      _
    %v36 = vld [vmem:[#allocation2] sm:$0xff]
    %v37 = vld [vmem:[#allocation5] sm:$0xff]
    %v38 = vadd.f32 %v36, %v37
    %39 = vst [vmem:[#allocation7] sm:$0xff] %v38
    // Predicated region
    $region18: #{tpu_custom_call.1} parent=1 // pred_check
      _
    $region19: #{tpu_custom_call.1} parent=1 // pred_check_branch
      %41 = sbr.rel (0) target = $region21
    $region20: #{tpu_custom_call.1} parent=1 // pred_region
      %s43 = ssub.s32 128, 128
      %44 = vsyncadd [#allocation4], %s43
      %s46 = sshll.u32 [#allocation7], 4
      %s47 = int_to_ptr.vmem [resolvable:$true] %s46
      %49 = dma.vmem_to_hbm [thread:$0]  %s47, 128, %s2, [#allocation4]
    $region21: #{tpu_custom_call.1} parent=1 // pred_fallthru
      _
    // Predicated region
    $region22: #{tpu_custom_call.1} parent=1 // pred_check
      _
    $region23: #{tpu_custom_call.1} parent=1 // pred_check_branch
      %51 = sbr.rel (0) target = $region25
    $region24: #{tpu_custom_call.1} parent=1 // pred_region
      %52 = dma.done [#allocation4], 128
    $region25: #{tpu_custom_call.1} parent=1 // pred_fallthru
      _
    %53 = vsyncpa [#allocation3], 1
    %54 = vsyncpa [#allocation6], 1
    %55 = vsyncpa [#allocation4], 1

</llo_original>
